<compile_context>
chip_gen: v6e
topology: v6e:2x2x1
jax: 0.10.0
libtpu: 0.0.40
codegen_flags: <defaults>
</compile_context>

<pallas_src>
import numpy as np
import jax
import jax.numpy as jnp
from jax import lax
from jax.experimental import pallas as pl
from jax.experimental.pallas import tpu as pltpu

# ---------------- problem sizes (small, consistent with the module) ----------
N      = 2    # batch
C_IN   = 4    # in_chan
C_OUT  = 3    # out_chan (module-level constant in the PyTorch file)
W_DIM  = 8    # w_dim
K      = 3    # kernel_size (padding=1 keeps spatial size)
H_IN   = 8    # input spatial
W_IN   = 8
H_OUT  = 16   # starting_size (upsample target)
W_OUT  = 16
HW_IN  = H_IN * W_IN      # 64
HW_OUT = H_OUT * W_OUT    # 256
EPS    = 1e-5
NEG_SLOPE = 0.2


def bilinear_matrix(in_size, out_size):
    """nn.Upsample(mode='bilinear', align_corners=False) as an (out,in) matrix."""
    scale = in_size / out_size
    o = np.arange(out_size)
    src = (o + 0.5) * scale - 0.5
    src = np.maximum(src, 0.0)
    i0 = np.minimum(np.floor(src).astype(np.int64), in_size - 1)
    i1 = np.minimum(i0 + 1, in_size - 1)
    lam = src - i0
    u = np.zeros((out_size, in_size), np.float32)
    u[o, i0] += (1.0 - lam).astype(np.float32)
    u[o, i1] += lam.astype(np.float32)
    return u


def build_upsample_tap_blocks():
    """(K*K, HW_IN, HW_OUT) per-tap matrices folding bilinear upsample +
    conv zero-pad + im2col shift.  Tap k = kh*K + kw maps x_flat (64,) to the
    flattened shifted tile up_pad[kh:kh+H_OUT, kw:kw+W_OUT] (256,).
    Interpolation weights only -- learned params are folded in the wrapper."""
    uh = bilinear_matrix(H_IN, H_OUT)                       # (H_OUT, H_IN)
    uw = bilinear_matrix(W_IN, W_OUT)                       # (W_OUT, W_IN)
    pad = K // 2
    uh_pad = np.zeros((H_OUT + 2 * pad, H_IN), np.float32)
    uh_pad[pad:pad + H_OUT] = uh
    uw_pad = np.zeros((W_OUT + 2 * pad, W_IN), np.float32)
    uw_pad[pad:pad + W_OUT] = uw
    blocks = []
    for kh in range(K):
        a = uh_pad[kh:kh + H_OUT]                           # (H_OUT, H_IN)
        for kw in range(K):
            b = uw_pad[kw:kw + W_OUT]                       # (W_OUT, W_IN)
            blocks.append(np.kron(a, b).T)                  # (HW_IN, HW_OUT)
    return np.stack(blocks, axis=0)                         # (9, 64, 256)


_UBLOCKS = build_upsample_tap_blocks()   # host-built constant (interp only)


# ---------------------------- Pallas kernel ----------------------------------
def stylegan_block_kernel(xbd_ref,    # (R, C_OUT*C_IN*HW_IN) bf16   VMEM
                          wfold_ref,  # (C_OUT*C_IN*HW_IN, HW_OUT) bf16  VMEM
                          noise_ref,  # (R, HW_OUT) f32              VMEM
                          psc_ref,    # (R, 4) f32: bias|nw|scale|shift  VMEM
                          out_ref):   # (R, HW_OUT) f32              VMEM
    r = out_ref.shape[0]              # R = N * C_OUT rows, row = c*N + s

    # upsample + zero-pad + im2col + Conv2d weights, all folded: ONE MXU matmul
    acc = jnp.dot(xbd_ref[...], wfold_ref[...],
                  preferred_element_type=jnp.float32)        # (R, 256) f32

    p = psc_ref[...]                                         # (R, 4)
    # Conv2d bias + InjectNoise (per-channel weight * per-sample noise plane)
    acc = acc + p[:, 0:1] + p[:, 1:2] * noise_ref[...]
    # LeakyReLU(0.2)
    acc = jnp.where(acc > 0, acc, NEG_SLOPE * acc)

    # InstanceNorm2d: fused single-pass stats -- one lane reduction over the
    # sublane-stacked [acc; acc*acc] slab gives E[x] and E[x^2] together.
    both = jnp.concatenate([acc, acc * acc], axis=0)         # (2R, 256)
    sums = jnp.sum(both, axis=-1, keepdims=True) * (1.0 / HW_OUT)
    mean, msq = sums[:r], sums[r:]
    var = jnp.maximum(msq - mean * mean, 0.0)                # biased, clamped
    normed = (acc - mean) * lax.rsqrt(var + EPS)

    # AdaIN affine (style scale/shift precomputed in the wrapper)
    out_ref[...] = p[:, 2:3] * normed + p[:, 3:4]


# ---------------------------- wrapper -----------------------------------------
def micro_stylegan_block(x, w_style, noise, params):
    conv_w, conv_b, noise_w, scale_w, scale_b, shift_w, shift_b = params
    n = x.shape[0]
    r = C_OUT * n                                   # fused rows, row = c*n + s

    # ---- wrapper-side layout plumbing / tiny param prep -----------------------
    # Fold the 3x3 conv weights into the upsample+pad+im2col tap matrices:
    #   wfold[c*256 + cin*64 + i, j] = sum_k conv_w[c,cin,kh,kw] * ublock_k[i,j]
    wk = jnp.transpose(conv_w, (2, 3, 0, 1)).reshape(K * K, C_OUT, C_IN)
    ublocks = jnp.asarray(_UBLOCKS)                           # (9, 64, 256)
    wfold = jnp.einsum('kco,kij->coij', wk, ublocks,
                       precision=lax.Precision.HIGHEST)
    wfold = wfold.reshape(C_OUT * C_IN * HW_IN, HW_OUT).astype(jnp.bfloat16)

    # Block-diagonal activation: row c*n+s carries x[s] (flattened c_in-major)
    # in column block c, so the single matmul lands directly in (r, 256) rows.
    x2d = x.reshape(n, C_IN * HW_IN)
    xbd = jnp.kron(jnp.eye(C_OUT, dtype=x2d.dtype), x2d).astype(jnp.bfloat16)

    # Packed per-row scalars: conv bias, noise weight, AdaIN scale, AdaIN shift.
    scale = w_style @ scale_w.T + scale_b                     # (n, C_OUT)
    shift = w_style @ shift_w.T + shift_b
    psc = jnp.stack([jnp.repeat(conv_b, n),
                     jnp.repeat(noise_w, n),
                     scale.T.reshape(r),
                     shift.T.reshape(r)], axis=1).astype(jnp.float32)   # (r, 4)

    # Per-row noise plane (shared across channels within a sample).
    # TODO(synk): InjectNoise draws torch.randn inside forward; the noise plane
    # is pre-sampled host-side and passed in (pltpu.prng_* could do it in-kernel).
    noise_t = jnp.tile(noise.reshape(n, HW_OUT), (C_OUT, 1)).astype(jnp.float32)

    out_flat = pl.pallas_call(
        stylegan_block_kernel,
        out_shape=jax.ShapeDtypeStruct((r, HW_OUT), jnp.float32),
        grid=(1,),          # single step: no batch sharding across v7x cores at N=2
        in_specs=[
            pl.BlockSpec((r, C_OUT * C_IN * HW_IN), lambda g: (0, 0)),
            pl.BlockSpec((C_OUT * C_IN * HW_IN, HW_OUT), lambda g: (0, 0)),
            pl.BlockSpec((r, HW_OUT), lambda g: (0, 0)),
            pl.BlockSpec((r, 4), lambda g: (0, 0)),
        ],
        out_specs=pl.BlockSpec((r, HW_OUT), lambda g: (0, 0)),
        compiler_params=pltpu.CompilerParams(
            dimension_semantics=("arbitrary",)),
    )(xbd, wfold, noise_t, psc)

    # rows are (c, s): reshape + transpose back to NCHW
    return out_flat.reshape(C_OUT, n, H_OUT, W_OUT).transpose(1, 0, 2, 3)


# ---------------------------- pure-JAX reference -----------------------------
def reference(x, w_style, noise, params, uh, uw):
    conv_w, conv_b, noise_w, scale_w, scale_b, shift_w, shift_b = params
    x_up = jnp.einsum('hi,ncij,wj->nchw', uh, x, uw,
                      precision=lax.Precision.HIGHEST)
    y = lax.conv_general_dilated(
        x_up, conv_w, window_strides=(1, 1), padding=[(1, 1), (1, 1)],
        dimension_numbers=('NCHW', 'OIHW', 'NCHW'),
        precision=lax.Precision.HIGHEST) + conv_b[None, :, None, None]
    y = y + noise_w[None, :, None, None] * noise
    y = jnp.where(y > 0, y, NEG_SLOPE * y)
    mean = y.mean(axis=(2, 3), keepdims=True)
    var = ((y - mean) ** 2).mean(axis=(2, 3), keepdims=True)
    yn = (y - mean) / jnp.sqrt(var + EPS)
    scale = w_style @ scale_w.T + scale_b
    shift = w_style @ shift_w.T + shift_b
    return scale[:, :, None, None] * yn + shift[:, :, None, None]


if __name__ == "__main__":
    key = jax.random.PRNGKey(0)
    ks = jax.random.split(key, 10)

    # deterministic "parameters" (shapes from the module's __init__)
    conv_w  = jax.random.normal(ks[0], (C_OUT, C_IN, K, K), jnp.float32) * 0.2
    conv_b  = jax.random.normal(ks[1], (C_OUT,), jnp.float32) * 0.1
    noise_w = jax.random.normal(ks[2], (C_OUT,), jnp.float32)          # InjectNoise
    scale_w = jax.random.normal(ks[3], (C_OUT, W_DIM), jnp.float32) * 0.3
    scale_b = jnp.ones((C_OUT,), jnp.float32)
    shift_w = jax.random.normal(ks[4], (C_OUT, W_DIM), jnp.float32) * 0.3
    shift_b = jnp.zeros((C_OUT,), jnp.float32)
    params = (conv_w, conv_b, noise_w, scale_w, scale_b, shift_w, shift_b)

    # inputs + the (deterministic, pre-sampled) injected noise plane
    x       = jax.random.normal(ks[5], (N, C_IN, H_IN, W_IN), jnp.float32)
    w_style = jax.random.normal(ks[6], (N, W_DIM), jnp.float32)
    noise   = jax.random.normal(ks[7], (N, 1, H_OUT, W_OUT), jnp.float32)

    out = micro_stylegan_block(x, w_style, noise, params)
    out = jax.block_until_ready(out)

    uh = jnp.asarray(bilinear_matrix(H_IN, H_OUT))
    uw = jnp.asarray(bilinear_matrix(W_IN, W_OUT))
    ref = reference(x, w_style, noise, params, uh, uw)

    assert out.shape == (N, C_OUT, H_OUT, W_OUT)
    assert bool(jnp.all(jnp.isfinite(out)))
    # Kernel matmul operands are bf16 (f32 accumulation); reference runs at
    # Precision.HIGHEST, so the tolerance absorbs the bf16 operand rounding.
    assert bool(jnp.allclose(out, ref, atol=3e-2, rtol=2e-2))

    print("KERNEL_OK")
</pallas_src>

<mosaic_0001>
module attributes {stable_mosaic.version = 11 : i64} {
  func.func @stylegan_block_kernel(%arg0: i32, %arg1: memref<6x768xbf16, #tpu.memory_space<vmem>>, %arg2: memref<768x256xbf16, #tpu.memory_space<vmem>>, %arg3: memref<6x256xf32, #tpu.memory_space<vmem>>, %arg4: memref<6x4xf32, #tpu.memory_space<vmem>>, %arg5: memref<6x256xf32, #tpu.memory_space<vmem>>) attributes {dimension_semantics = [#tpu.dimension_semantics<arbitrary>], iteration_bounds = array<i64: 1>, scalar_prefetch = 0 : i64, scratch_operands = 0 : i64, tpu.core_type = #tpu.core_type<tc>, window_params = [{pipeline_mode = #tpu.pipeline_mode<synchronous>, transform_indices = @transform_0, window_bounds = array<i64: 6, 768>}, {pipeline_mode = #tpu.pipeline_mode<synchronous>, transform_indices = @transform_1, window_bounds = array<i64: 768, 256>}, {pipeline_mode = #tpu.pipeline_mode<synchronous>, transform_indices = @transform_2, window_bounds = array<i64: 6, 256>}, {pipeline_mode = #tpu.pipeline_mode<synchronous>, transform_indices = @transform_3, window_bounds = array<i64: 6, 4>}, {pipeline_mode = #tpu.pipeline_mode<synchronous>, transform_indices = @transform_4, window_bounds = array<i64: 6, 256>}]} {
    %c0 = arith.constant 0 : index
    %c0_0 = arith.constant 0 : index
    %0 = vector.load %arg1[%c0, %c0_0] : memref<6x768xbf16, #tpu.memory_space<vmem>>, vector<6x768xbf16>
    %c0_1 = arith.constant 0 : index
    %c0_2 = arith.constant 0 : index
    %1 = vector.load %arg2[%c0_1, %c0_2] : memref<768x256xbf16, #tpu.memory_space<vmem>>, vector<768x256xbf16>
    %cst = arith.constant dense<0.000000e+00> : vector<6x256xf32>
    %2 = tpu.matmul %0, %1, %cst {dimension_numbers = #tpu.dot_dimension_numbers<[1], [0], [0], [1], [0, 0, 1, 1], [], []>} : vector<6x768xbf16>, vector<768x256xbf16>, vector<6x256xf32> -> vector<6x256xf32>
    %c0_3 = arith.constant 0 : index
    %c0_4 = arith.constant 0 : index
    %3 = vector.load %arg4[%c0_3, %c0_4] : memref<6x4xf32, #tpu.memory_space<vmem>>, vector<6x4xf32>
    %4 = vector.extract_strided_slice %3 {offsets = [0, 0], sizes = [6, 1], strides = [1, 1]} : vector<6x4xf32> to vector<6x1xf32>
    %5 = vector.broadcast %4 : vector<6x1xf32> to vector<6x256xf32>
    %6 = arith.addf %2, %5 : vector<6x256xf32>
    %7 = vector.extract_strided_slice %3 {offsets = [0, 1], sizes = [6, 1], strides = [1, 1]} : vector<6x4xf32> to vector<6x1xf32>
    %c0_5 = arith.constant 0 : index
    %c0_6 = arith.constant 0 : index
    %8 = vector.load %arg3[%c0_5, %c0_6] : memref<6x256xf32, #tpu.memory_space<vmem>>, vector<6x256xf32>
    %9 = vector.broadcast %7 : vector<6x1xf32> to vector<6x256xf32>
    %10 = arith.mulf %9, %8 : vector<6x256xf32>
    %11 = arith.addf %6, %10 : vector<6x256xf32>
    %cst_7 = arith.constant 0.000000e+00 : f32
    %12 = vector.broadcast %cst_7 : f32 to vector<6x256xf32>
    %13 = arith.cmpf ogt, %11, %12 : vector<6x256xf32>
    %cst_8 = arith.constant 2.000000e-01 : f32
    %14 = vector.broadcast %cst_8 : f32 to vector<6x256xf32>
    %15 = arith.mulf %14, %11 : vector<6x256xf32>
    %16 = arith.select %13, %11, %15 : vector<6x256xi1>, vector<6x256xf32>
    %17 = arith.mulf %16, %16 : vector<6x256xf32>
    %18 = tpu.concatenate %16, %17 in 0 : vector<6x256xf32>, vector<6x256xf32> -> vector<12x256xf32>
    %cst_9 = arith.constant dense<0.000000e+00> : vector<12xf32>
    %19 = vector.multi_reduction <add>, %18, %cst_9 [1] : vector<12x256xf32> to vector<12xf32>
    %20 = vector.shape_cast %19 : vector<12xf32> to vector<12x1xf32>
    %cst_10 = arith.constant 3.906250e-03 : f32
    %21 = vector.broadcast %cst_10 : f32 to vector<12x1xf32>
    %22 = arith.mulf %20, %21 : vector<12x1xf32>
    %23 = vector.extract_strided_slice %22 {offsets = [0, 0], sizes = [6, 1], strides = [1, 1]} : vector<12x1xf32> to vector<6x1xf32>
    %24 = vector.extract_strided_slice %22 {offsets = [6, 0], sizes = [6, 1], strides = [1, 1]} : vector<12x1xf32> to vector<6x1xf32>
    %25 = arith.mulf %23, %23 : vector<6x1xf32>
    %26 = arith.subf %24, %25 : vector<6x1xf32>
    %cst_11 = arith.constant 0.000000e+00 : f32
    %27 = vector.broadcast %cst_11 : f32 to vector<6x1xf32>
    %28 = arith.maximumf %26, %27 : vector<6x1xf32>
    %29 = vector.broadcast %23 : vector<6x1xf32> to vector<6x256xf32>
    %30 = arith.subf %16, %29 : vector<6x256xf32>
    %cst_12 = arith.constant 9.99999974E-6 : f32
    %31 = vector.broadcast %cst_12 : f32 to vector<6x1xf32>
    %32 = arith.addf %28, %31 : vector<6x1xf32>
    %33 = math.rsqrt %32 : vector<6x1xf32>
    %34 = vector.broadcast %33 : vector<6x1xf32> to vector<6x256xf32>
    %35 = arith.mulf %30, %34 : vector<6x256xf32>
    %36 = vector.extract_strided_slice %3 {offsets = [0, 2], sizes = [6, 1], strides = [1, 1]} : vector<6x4xf32> to vector<6x1xf32>
    %37 = vector.broadcast %36 : vector<6x1xf32> to vector<6x256xf32>
    %38 = arith.mulf %37, %35 : vector<6x256xf32>
    %39 = vector.extract_strided_slice %3 {offsets = [0, 3], sizes = [6, 1], strides = [1, 1]} : vector<6x4xf32> to vector<6x1xf32>
    %40 = vector.broadcast %39 : vector<6x1xf32> to vector<6x256xf32>
    %41 = arith.addf %38, %40 : vector<6x256xf32>
    %c0_13 = arith.constant 0 : index
    %c0_14 = arith.constant 0 : index
    %42 = vector.load %arg5[%c0_13, %c0_14] : memref<6x256xf32, #tpu.memory_space<vmem>>, vector<6x256xf32>
    tpu.vector_store %arg5[%c0_13, %c0_14], %41 {strides = array<i32>} : memref<6x256xf32, #tpu.memory_space<vmem>>, vector<6x256xf32>,
    return
  }
  func.func @transform_0(%arg0: i32) -> (i32, i32) {
    %c0_i32 = arith.constant 0 : i32
    %c0_i32_0 = arith.constant 0 : i32
    %c0_i32_1 = arith.constant 0 : i32
    return %c0_i32, %c0_i32_0 : i32, i32
  }
  func.func @transform_1(%arg0: i32) -> (i32, i32) {
    %c0_i32 = arith.constant 0 : i32
    %c0_i32_0 = arith.constant 0 : i32
    %c0_i32_1 = arith.constant 0 : i32
    return %c0_i32, %c0_i32_0 : i32, i32
  }
  func.func @transform_2(%arg0: i32) -> (i32, i32) {
    %c0_i32 = arith.constant 0 : i32
    %c0_i32_0 = arith.constant 0 : i32
    %c0_i32_1 = arith.constant 0 : i32
    return %c0_i32, %c0_i32_0 : i32, i32
  }
  func.func @transform_3(%arg0: i32) -> (i32, i32) {
    %c0_i32 = arith.constant 0 : i32
    %c0_i32_0 = arith.constant 0 : i32
    %c0_i32_1 = arith.constant 0 : i32
    return %c0_i32, %c0_i32_0 : i32, i32
  }
  func.func @transform_4(%arg0: i32) -> (i32, i32) {
    %c0_i32 = arith.constant 0 : i32
    %c0_i32_0 = arith.constant 0 : i32
    %c0_i32_1 = arith.constant 0 : i32
    return %c0_i32, %c0_i32_0 : i32, i32
  }
}

</mosaic_0001>

<llo_original>
// kernel: tpu_custom_call.1
$region0: #{tpu_custom_call.1}
  #allocation0 [shape = 'u32[]', space=smem, size = 0x4, offset = 0x4, fixed_abs, tag = 'smem constant byte address 0x4 - core index']
  #allocation1 [shape = 'u32[144,128]{1,0:T(1,128)}', space=vmem, size = 0x12000, scoped, tag = 'internal scratch']
  %s0 = inlined_call_operand.hbm [shape: bf16[6,768], index: 0, kind: input, shape index: {}]
  %s1 = inlined_call_operand.hbm [shape: bf16[768,256], index: 1, kind: input, shape index: {}]
  %s2 = inlined_call_operand.hbm [shape: f32[6,256], index: 2, kind: input, shape index: {}]
  %s3 = inlined_call_operand.vmem [shape: f32[6,4], index: 3, kind: input, shape index: {}]
  %s4 = inlined_call_operand.hbm [shape: f32[6,256], index: 4, kind: output, shape index: {}]
  %s5 = sld [smem:[#allocation0]]
  $region38: #{tpu_custom_call.1} parent=0
    _
  %s7 = ssub.s32 1, %s5
  %s8 = scalar_select 0, %s7, %s5
  $region1: #{tpu_custom_call.1} parent=0
    #allocation2 [shape = 'u8[12288]{0}', space=vmem, size = 0x3000, scoped, tag = 'input window, operand 0, single buffered']
    #allocation3 [shape = 's32[1]{0}', space=sflag, size = 0x4, scoped, tag = 'scoped memory for tpu_custom_call.1']
    #allocation4 [shape = 's32[1]{0}', space=sflag, size = 0x4, scoped, tag = 'scoped memory for tpu_custom_call.1']
    #allocation5 [shape = 'u8[393216]{0}', space=vmem, size = 0x60000, scoped, tag = 'input window, operand 1, single buffered']
    #allocation6 [shape = 's32[1]{0}', space=sflag, size = 0x4, scoped, tag = 'scoped memory for tpu_custom_call.1']
    #allocation7 [shape = 'u8[8192]{0}', space=vmem, size = 0x2000, scoped, tag = 'input window, operand 2, single buffered']
    #allocation8 [shape = 'u8[8192]{0}', space=vmem, size = 0x2000, scoped, tag = 'output window, operand 0, single buffered']
    %9 = vsyncpa [#allocation3], 0
    %10 = vsyncpa [#allocation6], 0
    %11 = vsyncpa [#allocation4], 0
    // Predicated region
    $region2: #{tpu_custom_call.1} parent=1 // pred_check
      _
    $region3: #{tpu_custom_call.1} parent=1 // pred_check_branch
      %13 = sbr.rel (0) target = $region5
    $region4: #{tpu_custom_call.1} parent=1 // pred_region
      %s15 = ssub.s32 384, 384
      %16 = vsyncadd [#allocation3], %s15
      %s18 = sshll.u32 [#allocation2], 4
      %s19 = int_to_ptr.vmem [resolvable:$true] %s18
      %21 = dma.hbm_to_vmem [thread:$0]  %s0, 384, %s19, [#allocation3]
    $region5: #{tpu_custom_call.1} parent=1 // pred_fallthru
      _
    // Predicated region
    $region6: #{tpu_custom_call.1} parent=1 // pred_check
      _
    $region7: #{tpu_custom_call.1} parent=1 // pred_check_branch
      %23 = sbr.rel (0) target = $region9
    $region8: #{tpu_custom_call.1} parent=1 // pred_region
      %s25 = ssub.s32 12288, 12288
      %26 = vsyncadd [#allocation6], %s25
      %s27 = sshll.u32 [#allocation5], 4
      %s28 = int_to_ptr.vmem [resolvable:$true] %s27
      %33 = dma.hbm_to_vmem [thread:$0]  %s1, 12288, %s28, [#allocation6], 128, 128, 8
    $region9: #{tpu_custom_call.1} parent=1 // pred_fallthru
      _
    // Predicated region
    $region10: #{tpu_custom_call.1} parent=1 // pred_check
      _
    $region11: #{tpu_custom_call.1} parent=1 // pred_check_branch
      %35 = sbr.rel (0) target = $region13
    $region12: #{tpu_custom_call.1} parent=1 // pred_region
      %s37 = ssub.s32 256, 256
      %38 = vsyncadd [#allocation6], %s37
      %s40 = sshll.u32 [#allocation7], 4
      %s41 = int_to_ptr.vmem [resolvable:$true] %s40
      %43 = dma.hbm_to_vmem [thread:$0]  %s2, 256, %s41, [#allocation6]
    $region13: #{tpu_custom_call.1} parent=1 // pred_fallthru
      _
    // Predicated region
    $region14: #{tpu_custom_call.1} parent=1 // pred_check
      _
    $region15: #{tpu_custom_call.1} parent=1 // pred_check_branch
      %45 = sbr.rel (0) target = $region17
    $region16: #{tpu_custom_call.1} parent=1 // pred_region
      _
    $region17: #{tpu_custom_call.1} parent=1 // pred_fallthru
      _
    // Predicated region
    $region18: #{tpu_custom_call.1} parent=1 // pred_check
      _
    $region19: #{tpu_custom_call.1} parent=1 // pred_check_branch
      %47 = sbr.rel (0) target = $region21
    $region20: #{tpu_custom_call.1} parent=1 // pred_region
      %48 = dma.done [#allocation3], 384
    $region21: #{tpu_custom_call.1} parent=1 // pred_fallthru
      _
    // Predicated region
    $region22: #{tpu_custom_call.1} parent=1 // pred_check
      _
    $region23: #{tpu_custom_call.1} parent=1 // pred_check_branch
      %50 = sbr.rel (0) target = $region25
    $region24: #{tpu_custom_call.1} parent=1 // pred_region
      %51 = dma.done [#allocation6], 12288
    $region25: #{tpu_custom_call.1} parent=1 // pred_fallthru
      _
    // Predicated region
    $region26: #{tpu_custom_call.1} parent=1 // pred_check
      _
    $region27: #{tpu_custom_call.1} parent=1 // pred_check_branch
      %53 = sbr.rel (0) target = $region29
    $region28: #{tpu_custom_call.1} parent=1 // pred_region
      %54 = dma.done [#allocation6], 256
    $region29: #{tpu_custom_call.1} parent=1 // pred_fallthru
      _
    %v55 = vld [vmem:[#allocation2] sm:$0x77]
    %v56 = vld [vmem:[#allocation2 + $0x8] sm:$0x77]
    %v57 = vld [vmem:[#allocation2 + $0x10] sm:$0x77]
    %v58 = vld [vmem:[#allocation5] sm:$0xff]
    %v59 = vld [vmem:[#allocation5 + $0x8] sm:$0xff]
    %v60 = vld [vmem:[#allocation5 + $0x10] sm:$0xff]
    %v61 = vld [vmem:[#allocation5 + $0x18] sm:$0xff]
    %v62 = vld [vmem:[#allocation5 + $0x20] sm:$0xff]
    %v63 = vld [vmem:[#allocation5 + $0x28] sm:$0xff]
    %v64 = vld [vmem:[#allocation5 + $0x30] sm:$0xff]
    %v65 = vld [vmem:[#allocation5 + $0x38] sm:$0xff]
    %v66 = vld [vmem:[#allocation5 + $0x40] sm:$0xff]
    %v67 = vld [vmem:[#allocation5 + $0x48] sm:$0xff]
    %v68 = vld [vmem:[#allocation5 + $0x50] sm:$0xff]
    %v69 = vld [vmem:[#allocation5 + $0x58] sm:$0xff]
    %v70 = vld [vmem:[#allocation5 + $0x60] sm:$0xff]
    %v71 = vld [vmem:[#allocation5 + $0x68] sm:$0xff]
    %v72 = vld [vmem:[#allocation5 + $0x70] sm:$0xff]
    %v73 = vld [vmem:[#allocation5 + $0x78] sm:$0xff]
    %v74 = vld [vmem:[#allocation5 + $0x80] sm:$0xff]
    %v75 = vld [vmem:[#allocation5 + $0x88] sm:$0xff]
    %v76 = vld [vmem:[#allocation5 + $0x90] sm:$0xff]
    %v77 = vld [vmem:[#allocation5 + $0x98] sm:$0xff]
    %v78 = vld [vmem:[#allocation5 + $0xa0] sm:$0xff]
    %v79 = vld [vmem:[#allocation5 + $0xa8] sm:$0xff]
    %v80 = vld [vmem:[#allocation5 + $0xb0] sm:$0xff]
    %v81 = vld [vmem:[#allocation5 + $0xb8] sm:$0xff]
    %v82 = vld [vmem:[#allocation5 + $0xc0] sm:$0xff]
    %v83 = vld [vmem:[#allocation5 + $0xc8] sm:$0xff]
    %v84 = vld [vmem:[#allocation5 + $0xd0] sm:$0xff]
    %v85 = vld [vmem:[#allocation5 + $0xd8] sm:$0xff]
    %v86 = vld [vmem:[#allocation5 + $0xe0] sm:$0xff]
    %v87 = vld [vmem:[#allocation5 + $0xe8] sm:$0xff]
    %v88 = vld [vmem:[#allocation5 + $0xf0] sm:$0xff]
    %v89 = vld [vmem:[#allocation5 + $0xf8] sm:$0xff]
    %v90 = vld [vmem:[#allocation5 + $0x100] sm:$0xff]
    %v91 = vld [vmem:[#allocation5 + $0x108] sm:$0xff]
    %v92 = vld [vmem:[#allocation5 + $0x110] sm:$0xff]
    %v93 = vld [vmem:[#allocation5 + $0x118] sm:$0xff]
    %v94 = vld [vmem:[#allocation5 + $0x120] sm:$0xff]
    %v95 = vld [vmem:[#allocation5 + $0x128] sm:$0xff]
    %v96 = vld [vmem:[#allocation5 + $0x130] sm:$0xff]
    %v97 = vld [vmem:[#allocation5 + $0x138] sm:$0xff]
    %v98 = vld [vmem:[#allocation5 + $0x140] sm:$0xff]
    %v99 = vld [vmem:[#allocation5 + $0x148] sm:$0xff]
    %v100 = vld [vmem:[#allocation5 + $0x150] sm:$0xff]
    %v101 = vld [vmem:[#allocation5 + $0x158] sm:$0xff]
    %v102 = vld [vmem:[#allocation5 + $0x160] sm:$0xff]
    %v103 = vld [vmem:[#allocation5 + $0x168] sm:$0xff]
    %v104 = vld [vmem:[#allocation5 + $0x170] sm:$0xff]
    %v105 = vld [vmem:[#allocation5 + $0x178] sm:$0xff]
    %v106 = vld [vmem:[#allocation5 + $0x180] sm:$0xff]
    %v107 = vld [vmem:[#allocation5 + $0x188] sm:$0xff]
    %v108 = vld [vmem:[#allocation5 + $0x190] sm:$0xff]
    %v109 = vld [vmem:[#allocation5 + $0x198] sm:$0xff]
    %v110 = vld [vmem:[#allocation5 + $0x1a0] sm:$0xff]
    %v111 = vld [vmem:[#allocation5 + $0x1a8] sm:$0xff]
    %v112 = vld [vmem:[#allocation5 + $0x1b0] sm:$0xff]
    %v113 = vld [vmem:[#allocation5 + $0x1b8] sm:$0xff]
    %v114 = vld [vmem:[#allocation5 + $0x1c0] sm:$0xff]
    %v115 = vld [vmem:[#allocation5 + $0x1c8] sm:$0xff]
    %v116 = vld [vmem:[#allocation5 + $0x1d0] sm:$0xff]
    %v117 = vld [vmem:[#allocation5 + $0x1d8] sm:$0xff]
    %v118 = vld [vmem:[#allocation5 + $0x1e0] sm:$0xff]
    %v119 = vld [vmem:[#allocation5 + $0x1e8] sm:$0xff]
    %v120 = vld [vmem:[#allocation5 + $0x1f0] sm:$0xff]
    %v121 = vld [vmem:[#allocation5 + $0x1f8] sm:$0xff]
    %v122 = vld [vmem:[#allocation5 + $0x200] sm:$0xff]
    %v123 = vld [vmem:[#allocation5 + $0x208] sm:$0xff]
    %v124 = vld [vmem:[#allocation5 + $0x210] sm:$0xff]
    %v125 = vld [vmem:[#allocation5 + $0x218] sm:$0xff]
    %v126 = vld [vmem:[#allocation5 + $0x220] sm:$0xff]
    %v127 = vld [vmem:[#allocation5 + $0x228] sm:$0xff]
    %v128 = vld [vmem:[#allocation5 + $0x230] sm:$0xff]
    %v129 = vld [vmem:[#allocation5 + $0x238] sm:$0xff]
    %v130 = vld [vmem:[#allocation5 + $0x240] sm:$0xff]
    %v131 = vld [vmem:[#allocation5 + $0x248] sm:$0xff]
    %v132 = vld [vmem:[#allocation5 + $0x250] sm:$0xff]
    %v133 = vld [vmem:[#allocation5 + $0x258] sm:$0xff]
    %v134 = vld [vmem:[#allocation5 + $0x260] sm:$0xff]
    %v135 = vld [vmem:[#allocation5 + $0x268] sm:$0xff]
    %v136 = vld [vmem:[#allocation5 + $0x270] sm:$0xff]
    %v137 = vld [vmem:[#allocation5 + $0x278] sm:$0xff]
    %v138 = vld [vmem:[#allocation5 + $0x280] sm:$0xff]
    %v139 = vld [vmem:[#allocation5 + $0x288] sm:$0xff]
    %v140 = vld [vmem:[#allocation5 + $0x290] sm:$0xff]
    %v141 = vld [vmem:[#allocation5 + $0x298] sm:$0xff]
    %v142 = vld [vmem:[#allocation5 + $0x2a0] sm:$0xff]
    %v143 = vld [vmem:[#allocation5 + $0x2a8] sm:$0xff]
    %v144 = vld [vmem:[#allocation5 + $0x2b0] sm:$0xff]
    %v145 = vld [vmem:[#allocation5 + $0x2b8] sm:$0xff]
    %v146 = vld [vmem:[#allocation5 + $0x2c0] sm:$0xff]
    %v147 = vld [vmem:[#allocation5 + $0x2c8] sm:$0xff]
    %v148 = vld [vmem:[#allocation5 + $0x2d0] sm:$0xff]
    %v149 = vld [vmem:[#allocation5 + $0x2d8] sm:$0xff]
    %v150 = vld [vmem:[#allocation5 + $0x2e0] sm:$0xff]
    %v151 = vld [vmem:[#allocation5 + $0x2e8] sm:$0xff]
    %v152 = vld [vmem:[#allocation5 + $0x2f0] sm:$0xff]
    %v153 = vld [vmem:[#allocation5 + $0x2f8] sm:$0xff]
    %v154 = vld [vmem:[%s3] sm:$0x3f]
    %156 = vset.pattern.permute.xlu0 0
    %157 = vperm.xlu0 %156, %v154
    %v158 = vpop.permute.xlu0 %157
    %v163 = vunpack.c.l.b16 %v55
    %v164 = vunpack.c.h.b16 %v55
    %v165 = vunpack.c.l.b16 %v56
    %v166 = vunpack.c.h.b16 %v56
    %v167 = vunpack.c.l.b16 %v57
    %v168 = vunpack.c.h.b16 %v57
    %v169 = vpack.c.b16 %v163, %v163
    %v170 = vpack.c.b16 %v164, %v164
    %v171 = vpack.c.b16 %v165, %v165
    %v172 = vpack.c.b16 %v166, %v166
    %v173 = vpack.c.b16 %v167, %v167
    %v174 = vpack.c.b16 %v168, %v168
    %v277 = vunpack.c.l.b16 %v58
    %v278 = vunpack.c.h.b16 %v58
    %v279 = vunpack.c.l.b16 %v59
    %v280 = vunpack.c.h.b16 %v59
    %v281 = vunpack.c.l.b16 %v60
    %v282 = vunpack.c.h.b16 %v60
    %v283 = vunpack.c.l.b16 %v61
    %v284 = vunpack.c.h.b16 %v61
    %v285 = vunpack.c.l.b16 %v62
    %v286 = vunpack.c.h.b16 %v62
    %v287 = vunpack.c.l.b16 %v63
    %v288 = vunpack.c.h.b16 %v63
    %v289 = vunpack.c.l.b16 %v64
    %v290 = vunpack.c.h.b16 %v64
    %v291 = vunpack.c.l.b16 %v65
    %v292 = vunpack.c.h.b16 %v65
    %v293 = vunpack.c.l.b16 %v66
    %v294 = vunpack.c.h.b16 %v66
    %v295 = vunpack.c.l.b16 %v67
    %v296 = vunpack.c.h.b16 %v67
    %v297 = vunpack.c.l.b16 %v68
    %v298 = vunpack.c.h.b16 %v68
    %v299 = vunpack.c.l.b16 %v69
    %v300 = vunpack.c.h.b16 %v69
    %v301 = vunpack.c.l.b16 %v70
    %v302 = vunpack.c.h.b16 %v70
    %v303 = vunpack.c.l.b16 %v71
    %v304 = vunpack.c.h.b16 %v71
    %v305 = vunpack.c.l.b16 %v72
    %v306 = vunpack.c.h.b16 %v72
    %v307 = vunpack.c.l.b16 %v73
    %v308 = vunpack.c.h.b16 %v73
    %v309 = vunpack.c.l.b16 %v74
    %v310 = vunpack.c.h.b16 %v74
    %v311 = vunpack.c.l.b16 %v75
    %v312 = vunpack.c.h.b16 %v75
    %v313 = vunpack.c.l.b16 %v76
    %v314 = vunpack.c.h.b16 %v76
    %v315 = vunpack.c.l.b16 %v77
    %v316 = vunpack.c.h.b16 %v77
    %v317 = vunpack.c.l.b16 %v78
    %v318 = vunpack.c.h.b16 %v78
    %v319 = vunpack.c.l.b16 %v79
    %v320 = vunpack.c.h.b16 %v79
    %v321 = vunpack.c.l.b16 %v80
    %v322 = vunpack.c.h.b16 %v80
    %v323 = vunpack.c.l.b16 %v81
    %v324 = vunpack.c.h.b16 %v81
    %v325 = vunpack.c.l.b16 %v82
    %v326 = vunpack.c.h.b16 %v82
    %v327 = vunpack.c.l.b16 %v83
    %v328 = vunpack.c.h.b16 %v83
    %v329 = vunpack.c.l.b16 %v84
    %v330 = vunpack.c.h.b16 %v84
    %v331 = vunpack.c.l.b16 %v85
    %v332 = vunpack.c.h.b16 %v85
    %v333 = vunpack.c.l.b16 %v86
    %v334 = vunpack.c.h.b16 %v86
    %v335 = vunpack.c.l.b16 %v87
    %v336 = vunpack.c.h.b16 %v87
    %v337 = vunpack.c.l.b16 %v88
    %v338 = vunpack.c.h.b16 %v88
    %v339 = vunpack.c.l.b16 %v89
    %v340 = vunpack.c.h.b16 %v89
    %v341 = vunpack.c.l.b16 %v90
    %v342 = vunpack.c.h.b16 %v90
    %v343 = vunpack.c.l.b16 %v91
    %v344 = vunpack.c.h.b16 %v91
    %v345 = vunpack.c.l.b16 %v92
    %v346 = vunpack.c.h.b16 %v92
    %v347 = vunpack.c.l.b16 %v93
    %v348 = vunpack.c.h.b16 %v93
    %v349 = vunpack.c.l.b16 %v94
    %v350 = vunpack.c.h.b16 %v94
    %v351 = vunpack.c.l.b16 %v95
    %v352 = vunpack.c.h.b16 %v95
    %v353 = vunpack.c.l.b16 %v96
    %v354 = vunpack.c.h.b16 %v96
    %v355 = vunpack.c.l.b16 %v97
    %v356 = vunpack.c.h.b16 %v97
    %v357 = vunpack.c.l.b16 %v98
    %v358 = vunpack.c.h.b16 %v98
    %v359 = vunpack.c.l.b16 %v99
    %v360 = vunpack.c.h.b16 %v99
    %v361 = vunpack.c.l.b16 %v100
    %v362 = vunpack.c.h.b16 %v100
    %v363 = vunpack.c.l.b16 %v101
    %v364 = vunpack.c.h.b16 %v101
    %v365 = vunpack.c.l.b16 %v102
    %v366 = vunpack.c.h.b16 %v102
    %v367 = vunpack.c.l.b16 %v103
    %v368 = vunpack.c.h.b16 %v103
    %v369 = vunpack.c.l.b16 %v104
    %v370 = vunpack.c.h.b16 %v104
    %v371 = vunpack.c.l.b16 %v105
    %v372 = vunpack.c.h.b16 %v105
    %v373 = vunpack.c.l.b16 %v106
    %v374 = vunpack.c.h.b16 %v106
    %v375 = vunpack.c.l.b16 %v107
    %v376 = vunpack.c.h.b16 %v107
    %v377 = vunpack.c.l.b16 %v108
    %v378 = vunpack.c.h.b16 %v108
    %v379 = vunpack.c.l.b16 %v109
    %v380 = vunpack.c.h.b16 %v109
    %v381 = vunpack.c.l.b16 %v110
    %v382 = vunpack.c.h.b16 %v110
    %v383 = vunpack.c.l.b16 %v111
    %v384 = vunpack.c.h.b16 %v111
    %v385 = vunpack.c.l.b16 %v112
    %v386 = vunpack.c.h.b16 %v112
    %v387 = vunpack.c.l.b16 %v113
    %v388 = vunpack.c.h.b16 %v113
    %v389 = vunpack.c.l.b16 %v114
    %v390 = vunpack.c.h.b16 %v114
    %v391 = vunpack.c.l.b16 %v115
    %v392 = vunpack.c.h.b16 %v115
    %v393 = vunpack.c.l.b16 %v116
    %v394 = vunpack.c.h.b16 %v116
    %v395 = vunpack.c.l.b16 %v117
    %v396 = vunpack.c.h.b16 %v117
    %v397 = vunpack.c.l.b16 %v118
    %v398 = vunpack.c.h.b16 %v118
    %v399 = vunpack.c.l.b16 %v119
    %v400 = vunpack.c.h.b16 %v119
    %v401 = vunpack.c.l.b16 %v120
    %v402 = vunpack.c.h.b16 %v120
    %v403 = vunpack.c.l.b16 %v121
    %v404 = vunpack.c.h.b16 %v121
    %v405 = vunpack.c.l.b16 %v122
    %v406 = vunpack.c.h.b16 %v122
    %v407 = vunpack.c.l.b16 %v123
    %v408 = vunpack.c.h.b16 %v123
    %v409 = vunpack.c.l.b16 %v124
    %v410 = vunpack.c.h.b16 %v124
    %v411 = vunpack.c.l.b16 %v125
    %v412 = vunpack.c.h.b16 %v125
    %v413 = vunpack.c.l.b16 %v126
    %v414 = vunpack.c.h.b16 %v126
    %v415 = vunpack.c.l.b16 %v127
    %v416 = vunpack.c.h.b16 %v127
    %v417 = vunpack.c.l.b16 %v128
    %v418 = vunpack.c.h.b16 %v128
    %v419 = vunpack.c.l.b16 %v129
    %v420 = vunpack.c.h.b16 %v129
    %v421 = vunpack.c.l.b16 %v130
    %v422 = vunpack.c.h.b16 %v130
    %v423 = vunpack.c.l.b16 %v131
    %v424 = vunpack.c.h.b16 %v131
    %v425 = vunpack.c.l.b16 %v132
    %v426 = vunpack.c.h.b16 %v132
    %v427 = vunpack.c.l.b16 %v133
    %v428 = vunpack.c.h.b16 %v133
    %v429 = vunpack.c.l.b16 %v134
    %v430 = vunpack.c.h.b16 %v134
    %v431 = vunpack.c.l.b16 %v135
    %v432 = vunpack.c.h.b16 %v135
    %v433 = vunpack.c.l.b16 %v136
    %v434 = vunpack.c.h.b16 %v136
    %v435 = vunpack.c.l.b16 %v137
    %v436 = vunpack.c.h.b16 %v137
    %v437 = vunpack.c.l.b16 %v138
    %v438 = vunpack.c.h.b16 %v138
    %v439 = vunpack.c.l.b16 %v139
    %v440 = vunpack.c.h.b16 %v139
    %v441 = vunpack.c.l.b16 %v140
    %v442 = vunpack.c.h.b16 %v140
    %v443 = vunpack.c.l.b16 %v141
    %v444 = vunpack.c.h.b16 %v141
    %v445 = vunpack.c.l.b16 %v142
    %v446 = vunpack.c.h.b16 %v142
    %v447 = vunpack.c.l.b16 %v143
    %v448 = vunpack.c.h.b16 %v143
    %v449 = vunpack.c.l.b16 %v144
    %v450 = vunpack.c.h.b16 %v144
    %v451 = vunpack.c.l.b16 %v145
    %v452 = vunpack.c.h.b16 %v145
    %v453 = vunpack.c.l.b16 %v146
    %v454 = vunpack.c.h.b16 %v146
    %v455 = vunpack.c.l.b16 %v147
    %v456 = vunpack.c.h.b16 %v147
    %v457 = vunpack.c.l.b16 %v148
    %v458 = vunpack.c.h.b16 %v148
    %v459 = vunpack.c.l.b16 %v149
    %v460 = vunpack.c.h.b16 %v149
    %v461 = vunpack.c.l.b16 %v150
    %v462 = vunpack.c.h.b16 %v150
    %v463 = vunpack.c.l.b16 %v151
    %v464 = vunpack.c.h.b16 %v151
    %v465 = vunpack.c.l.b16 %v152
    %v466 = vunpack.c.h.b16 %v152
    %v467 = vunpack.c.l.b16 %v153
    %v468 = vunpack.c.h.b16 %v153
    %v469 = vpack.c.b16 %v279, %v277
    %v470 = vpack.c.b16 %v280, %v278
    %v471 = vpack.c.b16 %v283, %v281
    %v472 = vpack.c.b16 %v284, %v282
    %v473 = vpack.c.b16 %v287, %v285
    %v474 = vpack.c.b16 %v288, %v286
    %v475 = vpack.c.b16 %v291, %v289
    %v476 = vpack.c.b16 %v292, %v290
    %v477 = vpack.c.b16 %v295, %v293
    %v478 = vpack.c.b16 %v296, %v294
    %v479 = vpack.c.b16 %v299, %v297
    %v480 = vpack.c.b16 %v300, %v298
    %v481 = vpack.c.b16 %v303, %v301
    %v482 = vpack.c.b16 %v304, %v302
    %v483 = vpack.c.b16 %v307, %v305
    %v484 = vpack.c.b16 %v308, %v306
    %v485 = vpack.c.b16 %v311, %v309
    %v486 = vpack.c.b16 %v312, %v310
    %v487 = vpack.c.b16 %v315, %v313
    %v488 = vpack.c.b16 %v316, %v314
    %v489 = vpack.c.b16 %v319, %v317
    %v490 = vpack.c.b16 %v320, %v318
    %v491 = vpack.c.b16 %v323, %v321
    %v492 = vpack.c.b16 %v324, %v322
    %v493 = vpack.c.b16 %v327, %v325
    %v494 = vpack.c.b16 %v328, %v326
    %v495 = vpack.c.b16 %v331, %v329
    %v496 = vpack.c.b16 %v332, %v330
    %v497 = vpack.c.b16 %v335, %v333
    %v498 = vpack.c.b16 %v336, %v334
    %v499 = vpack.c.b16 %v339, %v337
    %v500 = vpack.c.b16 %v340, %v338
    %v501 = vpack.c.b16 %v343, %v341
    %v502 = vpack.c.b16 %v344, %v342
    %v503 = vpack.c.b16 %v347, %v345
    %v504 = vpack.c.b16 %v348, %v346
    %v505 = vpack.c.b16 %v351, %v349
    %v506 = vpack.c.b16 %v352, %v350
    %v507 = vpack.c.b16 %v355, %v353
    %v508 = vpack.c.b16 %v356, %v354
    %v509 = vpack.c.b16 %v359, %v357
    %v510 = vpack.c.b16 %v360, %v358
    %v511 = vpack.c.b16 %v363, %v361
    %v512 = vpack.c.b16 %v364, %v362
    %v513 = vpack.c.b16 %v367, %v365
    %v514 = vpack.c.b16 %v368, %v366
    %v515 = vpack.c.b16 %v371, %v369
    %v516 = vpack.c.b16 %v372, %v370
    %v517 = vpack.c.b16 %v375, %v373
    %v518 = vpack.c.b16 %v376, %v374
    %v519 = vpack.c.b16 %v379, %v377
    %v520 = vpack.c.b16 %v380, %v378
    %v521 = vpack.c.b16 %v383, %v381
    %v522 = vpack.c.b16 %v384, %v382
    %v523 = vpack.c.b16 %v387, %v385
    %v524 = vpack.c.b16 %v388, %v386
    %v525 = vpack.c.b16 %v391, %v389
    %v526 = vpack.c.b16 %v392, %v390
    %v527 = vpack.c.b16 %v395, %v393
    %v528 = vpack.c.b16 %v396, %v394
    %v529 = vpack.c.b16 %v399, %v397
    %v530 = vpack.c.b16 %v400, %v398
    %v531 = vpack.c.b16 %v403, %v401
    %v532 = vpack.c.b16 %v404, %v402
    %v533 = vpack.c.b16 %v407, %v405
    %v534 = vpack.c.b16 %v408, %v406
    %v535 = vpack.c.b16 %v411, %v409
    %v536 = vpack.c.b16 %v412, %v410
    %v537 = vpack.c.b16 %v415, %v413
    %v538 = vpack.c.b16 %v416, %v414
    %v539 = vpack.c.b16 %v419, %v417
    %v540 = vpack.c.b16 %v420, %v418
    %v541 = vpack.c.b16 %v423, %v421
    %v542 = vpack.c.b16 %v424, %v422
    %v543 = vpack.c.b16 %v427, %v425
    %v544 = vpack.c.b16 %v428, %v426
    %v545 = vpack.c.b16 %v431, %v429
    %v546 = vpack.c.b16 %v432, %v430
    %v547 = vpack.c.b16 %v435, %v433
    %v548 = vpack.c.b16 %v436, %v434
    %v549 = vpack.c.b16 %v439, %v437
    %v550 = vpack.c.b16 %v440, %v438
    %v551 = vpack.c.b16 %v443, %v441
    %v552 = vpack.c.b16 %v444, %v442
    %v553 = vpack.c.b16 %v447, %v445
    %v554 = vpack.c.b16 %v448, %v446
    %v555 = vpack.c.b16 %v451, %v449
    %v556 = vpack.c.b16 %v452, %v450
    %v557 = vpack.c.b16 %v455, %v453
    %v558 = vpack.c.b16 %v456, %v454
    %v559 = vpack.c.b16 %v459, %v457
    %v560 = vpack.c.b16 %v460, %v458
    %v561 = vpack.c.b16 %v463, %v461
    %v562 = vpack.c.b16 %v464, %v462
    %v563 = vpack.c.b16 %v467, %v465
    %v564 = vpack.c.b16 %v468, %v466
    %661 = vmatprep.subr.bf16.mxu0 %v484
    %662 = vmatpush1.bf16.msra.mxu0 %v483
    %663 = vmatprep.subr.bf16.mxu0 %v482
    %664 = vmatpush1.bf16.msra.mxu0 %v481
    %665 = vmatprep.subr.bf16.mxu0 %v480
    %666 = vmatpush1.bf16.msra.mxu0 %v479
    %667 = vmatprep.subr.bf16.mxu0 %v478
    %668 = vmatpush1.bf16.msra.mxu0 %v477
    %669 = vmatprep.subr.bf16.mxu0 %v476
    %670 = vmatpush1.bf16.msra.mxu0 %v475
    %671 = vmatprep.subr.bf16.mxu0 %v474
    %672 = vmatpush1.bf16.msra.mxu0 %v473
    %673 = vmatprep.subr.bf16.mxu0 %v472
    %674 = vmatpush1.bf16.msra.mxu0 %v471
    %675 = vmatprep.subr.bf16.mxu0 %v470
    %676 = vmatpush1.bf16.msra.mxu0 %v469
    %677 = vmatprep.subr.bf16.mxu0 %v500
    %678 = vmatpush2.bf16.msra.mxu0 %v499
    %679 = vmatprep.subr.bf16.mxu0 %v498
    %680 = vmatpush2.bf16.msra.mxu0 %v497
    %681 = vmatprep.subr.bf16.mxu0 %v496
    %682 = vmatpush2.bf16.msra.mxu0 %v495
    %683 = vmatprep.subr.bf16.mxu0 %v494
    %684 = vmatpush2.bf16.msra.mxu0 %v493
    %685 = vmatprep.subr.bf16.mxu0 %v492
    %686 = vmatpush2.bf16.msra.mxu0 %v491
    %687 = vmatprep.subr.bf16.mxu0 %v490
    %688 = vmatpush2.bf16.msra.mxu0 %v489
    %689 = vmatprep.subr.bf16.mxu0 %v488
    %690 = vmatpush2.bf16.msra.mxu0 %v487
    %691 = vmatprep.subr.bf16.mxu0 %v486
    %692 = vmatpush2.bf16.msra.mxu0 %v485
    %693 = vmatprep.mubr.bf16.mxu0 %v170
    %694 = vmatmul.mubr.bf16.gmra.mxu0 %v169
    %v695 = vpop.f32.mrf.mxu0
    %v696 = vadd.f32 %v158, %v695
    %v697 = vpop.f32.mrf.mxu0
    %v698 = vadd.f32 %v158, %v697
    %v699 = vpop.f32.mrf.mxu0
    %v700 = vpop.f32.mrf.mxu0
    %701 = vdwg.mxu0
    %702 = vmatprep.subr.bf16.mxu0 %v516
    %703 = vmatpush1.bf16.msra.mxu0 %v515
    %704 = vmatprep.subr.bf16.mxu0 %v514
    %705 = vmatpush1.bf16.msra.mxu0 %v513
    %706 = vmatprep.subr.bf16.mxu0 %v512
    %707 = vmatpush1.bf16.msra.mxu0 %v511
    %708 = vmatprep.subr.bf16.mxu0 %v510
    %709 = vmatpush1.bf16.msra.mxu0 %v509
    %710 = vmatprep.subr.bf16.mxu0 %v508
    %711 = vmatpush1.bf16.msra.mxu0 %v507
    %712 = vmatprep.subr.bf16.mxu0 %v506
    %713 = vmatpush1.bf16.msra.mxu0 %v505
    %714 = vmatprep.subr.bf16.mxu0 %v504
    %715 = vmatpush1.bf16.msra.mxu0 %v503
    %716 = vmatprep.subr.bf16.mxu0 %v502
    %717 = vmatpush1.bf16.msra.mxu0 %v501
    %718 = vmatprep.subr.bf16.mxu0 %v532
    %719 = vmatpush2.bf16.msra.mxu0 %v531
    %720 = vmatprep.subr.bf16.mxu0 %v530
    %721 = vmatpush2.bf16.msra.mxu0 %v529
    %722 = vmatprep.subr.bf16.mxu0 %v528
    %723 = vmatpush2.bf16.msra.mxu0 %v527
    %724 = vmatprep.subr.bf16.mxu0 %v526
    %725 = vmatpush2.bf16.msra.mxu0 %v525
    %726 = vmatprep.subr.bf16.mxu0 %v524
    %727 = vmatpush2.bf16.msra.mxu0 %v523
    %728 = vmatprep.subr.bf16.mxu0 %v522
    %729 = vmatpush2.bf16.msra.mxu0 %v521
    %730 = vmatprep.subr.bf16.mxu0 %v520
    %731 = vmatpush2.bf16.msra.mxu0 %v519
    %732 = vmatprep.subr.bf16.mxu0 %v518
    %733 = vmatpush2.bf16.msra.mxu0 %v517
    %734 = vmatprep.mubr.bf16.mxu0 %v172
    %735 = vmatmul.mubr.bf16.gmra.mxu0 %v171
    %v736 = vpop.f32.mrf.mxu0
    %v737 = vadd.f32 %v696, %v736
    %v738 = vpop.f32.mrf.mxu0
    %v739 = vadd.f32 %v698, %v738
    %v740 = vpop.f32.mrf.mxu0
    %v741 = vpop.f32.mrf.mxu0
    %742 = vdwg.mxu0
    %743 = vmatprep.subr.bf16.mxu0 %v548
    %744 = vmatpush1.bf16.msra.mxu0 %v547
    %745 = vmatprep.subr.bf16.mxu0 %v546
    %746 = vmatpush1.bf16.msra.mxu0 %v545
    %747 = vmatprep.subr.bf16.mxu0 %v544
    %748 = vmatpush1.bf16.msra.mxu0 %v543
    %749 = vmatprep.subr.bf16.mxu0 %v542
    %750 = vmatpush1.bf16.msra.mxu0 %v541
    %751 = vmatprep.subr.bf16.mxu0 %v540
    %752 = vmatpush1.bf16.msra.mxu0 %v539
    %753 = vmatprep.subr.bf16.mxu0 %v538
    %754 = vmatpush1.bf16.msra.mxu0 %v537
    %755 = vmatprep.subr.bf16.mxu0 %v536
    %756 = vmatpush1.bf16.msra.mxu0 %v535
    %757 = vmatprep.subr.bf16.mxu0 %v534
    %758 = vmatpush1.bf16.msra.mxu0 %v533
    %759 = vmatprep.subr.bf16.mxu0 %v564
    %760 = vmatpush2.bf16.msra.mxu0 %v563
    %761 = vmatprep.subr.bf16.mxu0 %v562
    %762 = vmatpush2.bf16.msra.mxu0 %v561
    %763 = vmatprep.subr.bf16.mxu0 %v560
    %764 = vmatpush2.bf16.msra.mxu0 %v559
    %765 = vmatprep.subr.bf16.mxu0 %v558
    %766 = vmatpush2.bf16.msra.mxu0 %v557
    %767 = vmatprep.subr.bf16.mxu0 %v556
    %768 = vmatpush2.bf16.msra.mxu0 %v555
    %769 = vmatprep.subr.bf16.mxu0 %v554
    %770 = vmatpush2.bf16.msra.mxu0 %v553
    %771 = vmatprep.subr.bf16.mxu0 %v552
    %772 = vmatpush2.bf16.msra.mxu0 %v551
    %773 = vmatprep.subr.bf16.mxu0 %v550
    %774 = vmatpush2.bf16.msra.mxu0 %v549
    %775 = vmatprep.mubr.bf16.mxu0 %v174
    %776 = vmatmul.mubr.bf16.gmra.mxu0 %v173
    %v777 = vpop.f32.mrf.mxu0
    %v778 = vadd.f32 %v737, %v777
    %v779 = vpop.f32.mrf.mxu0
    %v780 = vadd.f32 %v739, %v779
    %v781 = vpop.f32.mrf.mxu0
    %v782 = vpop.f32.mrf.mxu0
    %783 = vdwg.mxu0
    %v784 = vld [vmem:[#allocation7] sm:$0x3f]
    %v785 = vld [vmem:[#allocation7 + $0x8] sm:$0x3f]
    %786 = vset.pattern.permute.xlu0 1
    %787 = vperm.xlu0 %786, %v154
    %v788 = vpop.permute.xlu0 %787
    %v790 = vmul.f32 %v788, %v784
    %v791 = vmul.f32 %v788, %v785
    %v792 = vadd.f32 %v778, %v790
    %v793 = vadd.f32 %v780, %v791
    %vm794 = vcmp.gt.f32.partialorder %v792, 0.0
    %vm795 = vcmp.gt.f32.partialorder %v793, 0.0
    %v796 = vmul.f32 %v792, 0.2
    %v797 = vmul.f32 %v793, 0.2
    %v798 = vsel %vm794, %v792, %v796
    %v799 = vsel %vm795, %v793, %v797
    %v800 = vmul.f32 %v798, %v798
    %v801 = vmul.f32 %v799, %v799
    %v804 = vrot.slane %v800, 2
    %v805 = vrot.slane %v801, 2
    %vm808 = vcmask 1045504
    %v809 = vsel %vm808, %v798, %v804
    %v810 = vsel %vm808, %v799, %v805
    %v811 = vadd.f32 %v809, %v810
    %812 = vadd.xlane.f32.xlu0 %v811
    %v813 = vpop.xlane.xlu0 %812
    %vm814 = vcmask 1043456
    %v815 = vsel %vm814, %v804, 0.0
    %v816 = vsel %vm814, %v805, 0.0
    %v817 = vadd.f32 %v815, %v816
    %818 = vadd.xlane.f32.xlu0 %v817
    %v819 = vpop.xlane.xlu0 %818
    %v820 = vmul.f32 %v813, 0.00390625
    %v821 = vmul.f32 %v819, 0.00390625
    %v822 = vmul.f32 %v820, %v820
    %v824 = vrot.slane %v822, 2
    %v826 = vsub.f32 %v820, %v824
    %v827 = vsub.f32 %v821, %v824
    %v828 = vmax.f32 %v826, 0.0
    %v829 = vmax.f32 %v827, 0.0
    %v830 = vsub.f32 %v798, %v820
    %v831 = vsub.f32 %v799, %v820
    %v832 = vadd.f32 %v828, 1e-05
    %v833 = vadd.f32 %v829, 1e-05
    %v834 = vrsqrt.pop %v832
    %v835 = vrsqrt.pop %v833
    %837 = vset.pattern.permute.xlu0 0
    %838 = vperm.xlu0 %837, %v834
    %v839 = vpop.permute.xlu0 %838
    %841 = vset.pattern.permute.xlu0 0
    %842 = vperm.xlu0 %841, %v835
    %v843 = vpop.permute.xlu0 %842
    %vm844 = vcmask 1041408
    %v845 = vrot.slane %v839, 6
    %v846 = vrot.slane %v843, 6
    %v847 = vsel %vm844, %v845, %v846
    %v849 = vmul.f32 %v830, %v847
    %v850 = vmul.f32 %v831, %v847
    %851 = vset.pattern.permute.xlu0 2
    %852 = vperm.xlu0 %851, %v154
    %v853 = vpop.permute.xlu0 %852
    %v855 = vmul.f32 %v853, %v849
    %v856 = vmul.f32 %v853, %v850
    %857 = vset.pattern.permute.xlu0 3
    %858 = vperm.xlu0 %857, %v154
    %v859 = vpop.permute.xlu0 %858
    %v861 = vadd.f32 %v855, %v859
    %v862 = vadd.f32 %v856, %v859
    %863 = vst [vmem:[#allocation8] sm:$0x3f] %v861
    %864 = vst [vmem:[#allocation8 + $0x8] sm:$0x3f] %v862
    // Predicated region
    $region30: #{tpu_custom_call.1} parent=1 // pred_check
      _
    $region31: #{tpu_custom_call.1} parent=1 // pred_check_branch
      %866 = sbr.rel (0) target = $region33
    $region32: #{tpu_custom_call.1} parent=1 // pred_region
      %s868 = ssub.s32 256, 256
      %869 = vsyncadd [#allocation4], %s868
      %s871 = sshll.u32 [#allocation8], 4
      %s872 = int_to_ptr.vmem [resolvable:$true] %s871
      %874 = dma.vmem_to_hbm [thread:$0]  %s872, 256, %s4, [#allocation4]
    $region33: #{tpu_custom_call.1} parent=1 // pred_fallthru
      _
    // Predicated region
    $region34: #{tpu_custom_call.1} parent=1 // pred_check
      _
    $region35: #{tpu_custom_call.1} parent=1 // pred_check_branch
      %876 = sbr.rel (0) target = $region37
    $region36: #{tpu_custom_call.1} parent=1 // pred_region
      %877 = dma.done [#allocation4], 256
    $region37: #{tpu_custom_call.1} parent=1 // pred_fallthru
      _
    %878 = vsyncpa [#allocation3], 1
    %879 = vsyncpa [#allocation6], 1
    %880 = vsyncpa [#allocation4], 1

</llo_original>
